<compile_context>
chip_gen: v7x
topology: tpu7x:2x2x1
jax: 0.10.0
libtpu: 0.0.40
codegen_flags: <defaults>
</compile_context>

<pallas_src>
import functools
import math

import jax
import jax.numpy as jnp
from jax.experimental import pallas as pl
from jax.experimental.pallas import tpu as pltpu


def _projector_kernel(x_ref, lnw_ref, lnb_ref, w1_ref, b1_ref, w2_ref, b2_ref,
                      o_ref, xn_ref, acc_ref, *, merge, hv):
    c = pl.program_id(1)  # hidden-dim chunk index

    # --- first chunk of each token tile: LayerNorm -> bf16 xn scratch, zero acc ---
    @pl.when(c == 0)
    def _():
        x = x_ref[...]                                  # (TM, merge*hv) bf16
        lnw = lnw_ref[...]                              # (1, hv) f32
        lnb = lnb_ref[...]                              # (1, hv) f32
        inv_hv = jnp.float32(1.0 / hv)
        parts = []
        for s in range(merge):                          # lane-contiguous slots
            seg = x[:, s * hv:(s + 1) * hv].astype(jnp.float32)
            mean = jnp.sum(seg, axis=-1, keepdims=True) * inv_hv
            cen = seg - mean
            var = jnp.sum(cen * cen, axis=-1, keepdims=True) * inv_hv
            y = cen * jax.lax.rsqrt(var + jnp.float32(1e-5)) * lnw + lnb
            parts.append(y.astype(xn_ref.dtype))        # cast per-slot to bf16
        xn_ref[...] = jnp.concatenate(parts, axis=-1)   # (TM, hidden) bf16
        acc_ref[...] = jnp.zeros_like(acc_ref)

    # --- streamed Linear1 chunk + exact erf GELU (f32) ---
    h = jnp.dot(xn_ref[...], w1_ref[...],
                preferred_element_type=jnp.float32) + b1_ref[...]
    h = 0.5 * h * (1.0 + jax.lax.erf(h * jnp.float32(1.0 / math.sqrt(2.0))))

    # --- streamed Linear2 chunk, f32 accumulate ---
    acc_ref[...] += jnp.dot(h.astype(w2_ref.dtype), w2_ref[...],
                            preferred_element_type=jnp.float32)

    # --- last chunk: add bias, store in output dtype ---
    @pl.when(c == pl.num_programs(1) - 1)
    def _():
        o_ref[...] = (acc_ref[...] + b2_ref[...]).astype(o_ref.dtype)


def _pick_hidden_chunk(hidden, target):
    """Largest lane-aligned (multiple of 128) divisor of `hidden` <= target."""
    if hidden <= target:
        return hidden
    ck = (target // 128) * 128
    while ck >= 128:
        if hidden % ck == 0:
            return ck
        ck -= 128
    return hidden  # no lane-aligned divisor: fall back to no streaming


def kimi_vl_projector(image_features, ln_w, ln_b, w1, b1, w2, b2,
                      *, block_tokens=512, chunk_hidden=512):
    """image_features: (N, M, Hv). Linear weights stored (in, out): kernel does x @ W."""
    n, m, hv = image_features.shape
    hidden = m * hv
    assert w1.shape == (hidden, hidden), "w1 must be pre-transposed to (in, out)"
    text_hidden = w2.shape[1]
    out_dtype = image_features.dtype

    # Flatten to (N, M*Hv) (matches .view(-1, hidden_size)) and cast to bf16:
    # halves activation HBM traffic / VMEM; LN stats stay f32 inside the kernel.
    x = image_features.reshape(n, hidden)
    if x.dtype != jnp.bfloat16:
        x = x.astype(jnp.bfloat16)

    # Token tile: multiple of 8 sublanes, capped at block_tokens; pad N up.
    tm = min(block_tokens, ((n + 7) // 8) * 8)
    n_pad = pl.cdiv(n, tm) * tm
    if n_pad != n:
        x = jnp.pad(x, ((0, n_pad - n), (0, 0)))

    # Hidden-dim streaming chunk.
    ck = _pick_hidden_chunk(hidden, chunk_hidden)
    n_chunks = hidden // ck

    # bf16 weights (MXU-native, halves HBM traffic); f32 biases / LN params.
    w1b = w1.astype(jnp.bfloat16)
    w2b = w2.astype(jnp.bfloat16)
    lnw2 = ln_w.reshape(1, hv).astype(jnp.float32)
    lnb2 = ln_b.reshape(1, hv).astype(jnp.float32)
    b1_2 = b1.reshape(1, hidden).astype(jnp.float32)
    b2_2 = b2.reshape(1, text_hidden).astype(jnp.float32)

    # VMEM budget capped by the chip's actual capacity.
    try:
        vmem_cap = int(pltpu.get_tpu_info().vmem_capacity_bytes)
    except Exception:
        vmem_cap = 64 * 1024 * 1024
    o_bytes = jnp.dtype(out_dtype).itemsize
    vmem_est = int(
        2 * tm * hidden * 2              # x tile (bf16, double-buffered)
        + 2 * tm * text_hidden * o_bytes  # out tile (double-buffered)
        + 2 * hidden * ck * 2            # w1 chunk (bf16, double-buffered)
        + 2 * ck * text_hidden * 2       # w2 chunk (bf16, double-buffered)
        + 2 * ck * 4                     # b1 chunk (double-buffered)
        + (2 * hv + text_hidden) * 4     # lnw/lnb/b2 (single-buffered)
        + tm * hidden * 2                # xn scratch (bf16)
        + tm * text_hidden * 4           # acc scratch (f32)
        + 2 * tm * ck * 4                # f32 chunk intermediates headroom
    )
    vmem_limit = int(min(vmem_cap - 4 * 1024 * 1024,
                         max(32 * 1024 * 1024, int(vmem_est * 1.25))))

    kernel = functools.partial(_projector_kernel, merge=m, hv=hv)
    const = pl.Buffered(1)  # single-buffer constant-index operands

    out = pl.pallas_call(
        kernel,
        out_shape=jax.ShapeDtypeStruct((n_pad, text_hidden), out_dtype),
        grid_spec=pltpu.PrefetchScalarGridSpec(
            num_scalar_prefetch=0,
            grid=(n_pad // tm, n_chunks),
            in_specs=[
                # activations: tiled over tokens, resident across chunk axis
                pl.BlockSpec((tm, hidden), lambda i, c: (i, 0)),
                # LN params: constant -> single-buffered
                pl.BlockSpec((1, hv), lambda i, c: (0, 0), pipeline_mode=const),
                pl.BlockSpec((1, hv), lambda i, c: (0, 0), pipeline_mode=const),
                # streamed weight / bias chunks (double-buffered behind MXU)
                pl.BlockSpec((hidden, ck), lambda i, c: (0, c)),       # w1 cols
                pl.BlockSpec((1, ck), lambda i, c: (0, c)),            # b1 chunk
                pl.BlockSpec((ck, text_hidden), lambda i, c: (c, 0)),  # w2 rows
                # b2: constant -> single-buffered
                pl.BlockSpec((1, text_hidden), lambda i, c: (0, 0),
                             pipeline_mode=const),
            ],
            out_specs=pl.BlockSpec((tm, text_hidden), lambda i, c: (i, 0)),
            scratch_shapes=[
                pltpu.VMEM((tm, hidden), jnp.bfloat16),        # xn
                pltpu.VMEM((tm, text_hidden), jnp.float32),    # acc
            ],
        ),
        compiler_params=pltpu.CompilerParams(
            dimension_semantics=("parallel", "arbitrary"),
            vmem_limit_bytes=vmem_limit,
        ),
    )(x, lnw2, lnb2, w1b, b1_2, w2b, b2_2)

    return out[:n]


def _reference(image_features, ln_w, ln_b, w1, b1, w2, b2):
    """Pure-JAX reference mirroring the kernel's bf16/f32 mixed precision."""
    n, m, hv = image_features.shape
    # wrapper casts activations to bf16; LN stats in f32
    x = image_features.astype(jnp.bfloat16).astype(jnp.float32)
    mean = jnp.mean(x, axis=-1, keepdims=True)
    var = jnp.mean((x - mean) ** 2, axis=-1, keepdims=True)
    xn = (x - mean) / jnp.sqrt(var + 1e-5) * ln_w + ln_b
    h = xn.reshape(n, m * hv)
    h = jnp.dot(h.astype(jnp.bfloat16), w1.astype(jnp.bfloat16),
                preferred_element_type=jnp.float32) + b1
    h = jax.nn.gelu(h, approximate=False)
    return jnp.dot(h.astype(jnp.bfloat16), w2.astype(jnp.bfloat16),
                   preferred_element_type=jnp.float32) + b2


if __name__ == "__main__":
    # Small synthetic config:
    #   vision hidden_size = 64, merge_kernel_size = (2, 2) -> projector hidden = 256
    #   text hidden_size   = 128
    # chunk_hidden=128 -> 2 hidden chunks: exercises the streamed-weight
    # accumulation path; block_tokens=16 with 24 tokens exercises padding +
    # multiple token tiles.
    VISION_HIDDEN = 64
    MERGE = (2, 2)
    HIDDEN = VISION_HIDDEN * MERGE[0] * MERGE[1]   # 256
    TEXT_HIDDEN = 128
    N_TOKENS = 24                                  # merged image tokens

    key = jax.random.PRNGKey(0)
    k_x, k_lnw, k_lnb, k_w1, k_b1, k_w2, k_b2 = jax.random.split(key, 7)

    image_features = jax.random.normal(
        k_x, (N_TOKENS, MERGE[0] * MERGE[1], VISION_HIDDEN), dtype=jnp.float32
    )
    ln_w = 1.0 + 0.1 * jax.random.normal(k_lnw, (VISION_HIDDEN,), dtype=jnp.float32)
    ln_b = 0.1 * jax.random.normal(k_lnb, (VISION_HIDDEN,), dtype=jnp.float32)
    # Linear weights stored (in, out) so the kernel computes x @ W + b
    # (PyTorch nn.Linear stores (out, in) — the caller must transpose).
    w1 = 0.05 * jax.random.normal(k_w1, (HIDDEN, HIDDEN), dtype=jnp.float32)
    b1 = 0.05 * jax.random.normal(k_b1, (HIDDEN,), dtype=jnp.float32)
    w2 = 0.05 * jax.random.normal(k_w2, (HIDDEN, TEXT_HIDDEN), dtype=jnp.float32)
    b2 = 0.05 * jax.random.normal(k_b2, (TEXT_HIDDEN,), dtype=jnp.float32)

    out = kimi_vl_projector(image_features, ln_w, ln_b, w1, b1, w2, b2,
                            block_tokens=16, chunk_hidden=128)
    out = jax.block_until_ready(out)

    ref = _reference(image_features, ln_w, ln_b, w1, b1, w2, b2)
    assert out.shape == (N_TOKENS, TEXT_HIDDEN)
    assert jnp.allclose(out, ref, atol=2e-2, rtol=2e-2), "mismatch vs reference"

    print("KERNEL_OK")
</pallas_src>

<mosaic_0001>
module attributes {stable_mosaic.version = 11 : i64} {
  func.func @_projector_kernel(%arg0: i32, %arg1: i32, %arg2: memref<16x256xbf16, #tpu.memory_space<vmem>>, %arg3: memref<1x64xf32, #tpu.memory_space<vmem>>, %arg4: memref<1x64xf32, #tpu.memory_space<vmem>>, %arg5: memref<256x128xbf16, #tpu.memory_space<vmem>>, %arg6: memref<1x128xf32, #tpu.memory_space<vmem>>, %arg7: memref<128x128xbf16, #tpu.memory_space<vmem>>, %arg8: memref<1x128xf32, #tpu.memory_space<vmem>>, %arg9: memref<16x128xf32, #tpu.memory_space<vmem>>, %arg10: memref<16x256xbf16, #tpu.memory_space<vmem>>, %arg11: memref<16x128xf32, #tpu.memory_space<vmem>>) attributes {dimension_semantics = [#tpu.dimension_semantics<parallel>, #tpu.dimension_semantics<arbitrary>], iteration_bounds = array<i64: 2, 2>, scalar_prefetch = 0 : i64, scratch_operands = 2 : i64, tpu.core_type = #tpu.core_type<tc>, window_params = [{transform_indices = @transform_0, window_bounds = array<i64: 16, 256>}, {pipeline_mode = #tpu.pipeline_mode<synchronous>, transform_indices = @transform_1, window_bounds = array<i64: 1, 64>}, {pipeline_mode = #tpu.pipeline_mode<synchronous>, transform_indices = @transform_2, window_bounds = array<i64: 1, 64>}, {transform_indices = @transform_3, window_bounds = array<i64: 256, 128>}, {transform_indices = @transform_4, window_bounds = array<i64: 1, 128>}, {transform_indices = @transform_5, window_bounds = array<i64: 128, 128>}, {pipeline_mode = #tpu.pipeline_mode<synchronous>, transform_indices = @transform_6, window_bounds = array<i64: 1, 128>}, {transform_indices = @transform_7, window_bounds = array<i64: 16, 128>}]} {
    %c0_i32 = arith.constant 0 : i32
    %0 = arith.cmpi eq, %arg1, %c0_i32 : i32
    %1 = arith.extui %0 : i1 to i32
    %c0_i32_0 = arith.constant 0 : i32
    %2 = arith.cmpi ne, %1, %c0_i32_0 : i32
    scf.if %2 {
      %c0_17 = arith.constant 0 : index
      %c0_18 = arith.constant 0 : index
      %26 = vector.load %arg2[%c0_17, %c0_18] : memref<16x256xbf16, #tpu.memory_space<vmem>>, vector<16x256xbf16>
      %c0_19 = arith.constant 0 : index
      %c0_20 = arith.constant 0 : index
      %27 = vector.load %arg3[%c0_19, %c0_20] : memref<1x64xf32, #tpu.memory_space<vmem>>, vector<1x64xf32>
      %c0_21 = arith.constant 0 : index
      %c0_22 = arith.constant 0 : index
      %28 = vector.load %arg4[%c0_21, %c0_22] : memref<1x64xf32, #tpu.memory_space<vmem>>, vector<1x64xf32>
      %29 = vector.extract_strided_slice %26 {offsets = [0, 0], sizes = [16, 64], strides = [1, 1]} : vector<16x256xbf16> to vector<16x64xbf16>
      %30 = arith.extf %29 : vector<16x64xbf16> to vector<16x64xf32>
      %cst_23 = arith.constant dense<0.000000e+00> : vector<16xf32>
      %31 = vector.multi_reduction <add>, %30, %cst_23 [1] : vector<16x64xf32> to vector<16xf32>
      %32 = vector.shape_cast %31 : vector<16xf32> to vector<16x1xf32>
      %cst_24 = arith.constant 1.562500e-02 : f32
      %33 = vector.broadcast %cst_24 : f32 to vector<16x1xf32>
      %34 = arith.mulf %32, %33 : vector<16x1xf32>
      %35 = vector.broadcast %34 : vector<16x1xf32> to vector<16x64xf32>
      %36 = arith.subf %30, %35 : vector<16x64xf32>
      %37 = arith.mulf %36, %36 : vector<16x64xf32>
      %cst_25 = arith.constant dense<0.000000e+00> : vector<16xf32>
      %38 = vector.multi_reduction <add>, %37, %cst_25 [1] : vector<16x64xf32> to vector<16xf32>
      %39 = vector.shape_cast %38 : vector<16xf32> to vector<16x1xf32>
      %cst_26 = arith.constant 1.562500e-02 : f32
      %40 = vector.broadcast %cst_26 : f32 to vector<16x1xf32>
      %41 = arith.mulf %39, %40 : vector<16x1xf32>
      %cst_27 = arith.constant 9.99999974E-6 : f32
      %42 = vector.broadcast %cst_27 : f32 to vector<16x1xf32>
      %43 = arith.addf %41, %42 : vector<16x1xf32>
      %44 = math.rsqrt %43 : vector<16x1xf32>
      %45 = vector.broadcast %44 : vector<16x1xf32> to vector<16x64xf32>
      %46 = arith.mulf %36, %45 : vector<16x64xf32>
      %47 = vector.broadcast %27 : vector<1x64xf32> to vector<16x64xf32>
      %48 = arith.mulf %46, %47 : vector<16x64xf32>
      %49 = vector.broadcast %28 : vector<1x64xf32> to vector<16x64xf32>
      %50 = arith.addf %48, %49 : vector<16x64xf32>
      %51 = arith.truncf %50 : vector<16x64xf32> to vector<16x64xbf16>
      %52 = vector.extract_strided_slice %26 {offsets = [0, 64], sizes = [16, 64], strides = [1, 1]} : vector<16x256xbf16> to vector<16x64xbf16>
      %53 = arith.extf %52 : vector<16x64xbf16> to vector<16x64xf32>
      %cst_28 = arith.constant dense<0.000000e+00> : vector<16xf32>
      %54 = vector.multi_reduction <add>, %53, %cst_28 [1] : vector<16x64xf32> to vector<16xf32>
      %55 = vector.shape_cast %54 : vector<16xf32> to vector<16x1xf32>
      %cst_29 = arith.constant 1.562500e-02 : f32
      %56 = vector.broadcast %cst_29 : f32 to vector<16x1xf32>
      %57 = arith.mulf %55, %56 : vector<16x1xf32>
      %58 = vector.broadcast %57 : vector<16x1xf32> to vector<16x64xf32>
      %59 = arith.subf %53, %58 : vector<16x64xf32>
      %60 = arith.mulf %59, %59 : vector<16x64xf32>
      %cst_30 = arith.constant dense<0.000000e+00> : vector<16xf32>
      %61 = vector.multi_reduction <add>, %60, %cst_30 [1] : vector<16x64xf32> to vector<16xf32>
      %62 = vector.shape_cast %61 : vector<16xf32> to vector<16x1xf32>
      %cst_31 = arith.constant 1.562500e-02 : f32
      %63 = vector.broadcast %cst_31 : f32 to vector<16x1xf32>
      %64 = arith.mulf %62, %63 : vector<16x1xf32>
      %cst_32 = arith.constant 9.99999974E-6 : f32
      %65 = vector.broadcast %cst_32 : f32 to vector<16x1xf32>
      %66 = arith.addf %64, %65 : vector<16x1xf32>
      %67 = math.rsqrt %66 : vector<16x1xf32>
      %68 = vector.broadcast %67 : vector<16x1xf32> to vector<16x64xf32>
      %69 = arith.mulf %59, %68 : vector<16x64xf32>
      %70 = vector.broadcast %27 : vector<1x64xf32> to vector<16x64xf32>
      %71 = arith.mulf %69, %70 : vector<16x64xf32>
      %72 = vector.broadcast %28 : vector<1x64xf32> to vector<16x64xf32>
      %73 = arith.addf %71, %72 : vector<16x64xf32>
      %74 = arith.truncf %73 : vector<16x64xf32> to vector<16x64xbf16>
      %75 = vector.extract_strided_slice %26 {offsets = [0, 128], sizes = [16, 64], strides = [1, 1]} : vector<16x256xbf16> to vector<16x64xbf16>
      %76 = arith.extf %75 : vector<16x64xbf16> to vector<16x64xf32>
      %cst_33 = arith.constant dense<0.000000e+00> : vector<16xf32>
      %77 = vector.multi_reduction <add>, %76, %cst_33 [1] : vector<16x64xf32> to vector<16xf32>
      %78 = vector.shape_cast %77 : vector<16xf32> to vector<16x1xf32>
      %cst_34 = arith.constant 1.562500e-02 : f32
      %79 = vector.broadcast %cst_34 : f32 to vector<16x1xf32>
      %80 = arith.mulf %78, %79 : vector<16x1xf32>
      %81 = vector.broadcast %80 : vector<16x1xf32> to vector<16x64xf32>
      %82 = arith.subf %76, %81 : vector<16x64xf32>
      %83 = arith.mulf %82, %82 : vector<16x64xf32>
      %cst_35 = arith.constant dense<0.000000e+00> : vector<16xf32>
      %84 = vector.multi_reduction <add>, %83, %cst_35 [1] : vector<16x64xf32> to vector<16xf32>
      %85 = vector.shape_cast %84 : vector<16xf32> to vector<16x1xf32>
      %cst_36 = arith.constant 1.562500e-02 : f32
      %86 = vector.broadcast %cst_36 : f32 to vector<16x1xf32>
      %87 = arith.mulf %85, %86 : vector<16x1xf32>
      %cst_37 = arith.constant 9.99999974E-6 : f32
      %88 = vector.broadcast %cst_37 : f32 to vector<16x1xf32>
      %89 = arith.addf %87, %88 : vector<16x1xf32>
      %90 = math.rsqrt %89 : vector<16x1xf32>
      %91 = vector.broadcast %90 : vector<16x1xf32> to vector<16x64xf32>
      %92 = arith.mulf %82, %91 : vector<16x64xf32>
      %93 = vector.broadcast %27 : vector<1x64xf32> to vector<16x64xf32>
      %94 = arith.mulf %92, %93 : vector<16x64xf32>
      %95 = vector.broadcast %28 : vector<1x64xf32> to vector<16x64xf32>
      %96 = arith.addf %94, %95 : vector<16x64xf32>
      %97 = arith.truncf %96 : vector<16x64xf32> to vector<16x64xbf16>
      %98 = vector.extract_strided_slice %26 {offsets = [0, 192], sizes = [16, 64], strides = [1, 1]} : vector<16x256xbf16> to vector<16x64xbf16>
      %99 = arith.extf %98 : vector<16x64xbf16> to vector<16x64xf32>
      %cst_38 = arith.constant dense<0.000000e+00> : vector<16xf32>
      %100 = vector.multi_reduction <add>, %99, %cst_38 [1] : vector<16x64xf32> to vector<16xf32>
      %101 = vector.shape_cast %100 : vector<16xf32> to vector<16x1xf32>
      %cst_39 = arith.constant 1.562500e-02 : f32
      %102 = vector.broadcast %cst_39 : f32 to vector<16x1xf32>
      %103 = arith.mulf %101, %102 : vector<16x1xf32>
      %104 = vector.broadcast %103 : vector<16x1xf32> to vector<16x64xf32>
      %105 = arith.subf %99, %104 : vector<16x64xf32>
      %106 = arith.mulf %105, %105 : vector<16x64xf32>
      %cst_40 = arith.constant dense<0.000000e+00> : vector<16xf32>
      %107 = vector.multi_reduction <add>, %106, %cst_40 [1] : vector<16x64xf32> to vector<16xf32>
      %108 = vector.shape_cast %107 : vector<16xf32> to vector<16x1xf32>
      %cst_41 = arith.constant 1.562500e-02 : f32
      %109 = vector.broadcast %cst_41 : f32 to vector<16x1xf32>
      %110 = arith.mulf %108, %109 : vector<16x1xf32>
      %cst_42 = arith.constant 9.99999974E-6 : f32
      %111 = vector.broadcast %cst_42 : f32 to vector<16x1xf32>
      %112 = arith.addf %110, %111 : vector<16x1xf32>
      %113 = math.rsqrt %112 : vector<16x1xf32>
      %114 = vector.broadcast %113 : vector<16x1xf32> to vector<16x64xf32>
      %115 = arith.mulf %105, %114 : vector<16x64xf32>
      %116 = vector.broadcast %27 : vector<1x64xf32> to vector<16x64xf32>
      %117 = arith.mulf %115, %116 : vector<16x64xf32>
      %118 = vector.broadcast %28 : vector<1x64xf32> to vector<16x64xf32>
      %119 = arith.addf %117, %118 : vector<16x64xf32>
      %120 = arith.truncf %119 : vector<16x64xf32> to vector<16x64xbf16>
      %121 = tpu.concatenate %51, %74, %97, %120 in 1 : vector<16x64xbf16>, vector<16x64xbf16>, vector<16x64xbf16>, vector<16x64xbf16> -> vector<16x256xbf16>
      %c0_43 = arith.constant 0 : index
      %c0_44 = arith.constant 0 : index
      %122 = vector.load %arg10[%c0_43, %c0_44] : memref<16x256xbf16, #tpu.memory_space<vmem>>, vector<16x256xbf16>
      tpu.vector_store %arg10[%c0_43, %c0_44], %121 {strides = array<i32>} : memref<16x256xbf16, #tpu.memory_space<vmem>>, vector<16x256xbf16>,
      %cst_45 = arith.constant 0.000000e+00 : f32
      %123 = vector.broadcast %cst_45 : f32 to vector<16x128xf32>
      %c0_46 = arith.constant 0 : index
      %c0_47 = arith.constant 0 : index
      %124 = vector.load %arg11[%c0_46, %c0_47] : memref<16x128xf32, #tpu.memory_space<vmem>>, vector<16x128xf32>
      tpu.vector_store %arg11[%c0_46, %c0_47], %123 {strides = array<i32>} : memref<16x128xf32, #tpu.memory_space<vmem>>, vector<16x128xf32>,
    } else {
    }
    %c0 = arith.constant 0 : index
    %c0_1 = arith.constant 0 : index
    %3 = vector.load %arg10[%c0, %c0_1] : memref<16x256xbf16, #tpu.memory_space<vmem>>, vector<16x256xbf16>
    %c0_2 = arith.constant 0 : index
    %c0_3 = arith.constant 0 : index
    %4 = vector.load %arg5[%c0_2, %c0_3] : memref<256x128xbf16, #tpu.memory_space<vmem>>, vector<256x128xbf16>
    %cst = arith.constant dense<0.000000e+00> : vector<16x128xf32>
    %5 = tpu.matmul %3, %4, %cst {dimension_numbers = #tpu.dot_dimension_numbers<[1], [0], [0], [1], [0, 0, 1, 1], [], []>} : vector<16x256xbf16>, vector<256x128xbf16>, vector<16x128xf32> -> vector<16x128xf32>
    %c0_4 = arith.constant 0 : index
    %c0_5 = arith.constant 0 : index
    %6 = vector.load %arg6[%c0_4, %c0_5] : memref<1x128xf32, #tpu.memory_space<vmem>>, vector<1x128xf32>
    %7 = vector.broadcast %6 : vector<1x128xf32> to vector<16x128xf32>
    %8 = arith.addf %5, %7 : vector<16x128xf32>
    %cst_6 = arith.constant 5.000000e-01 : f32
    %9 = vector.broadcast %cst_6 : f32 to vector<16x128xf32>
    %10 = arith.mulf %9, %8 : vector<16x128xf32>
    %cst_7 = arith.constant 0.707106769 : f32
    %11 = vector.broadcast %cst_7 : f32 to vector<16x128xf32>
    %12 = arith.mulf %8, %11 : vector<16x128xf32>
    %13 = math.erf %12 : vector<16x128xf32>
    %cst_8 = arith.constant 1.000000e+00 : f32
    %14 = vector.broadcast %cst_8 : f32 to vector<16x128xf32>
    %15 = arith.addf %14, %13 : vector<16x128xf32>
    %16 = arith.mulf %10, %15 : vector<16x128xf32>
    %c0_9 = arith.constant 0 : index
    %c0_10 = arith.constant 0 : index
    %17 = vector.load %arg11[%c0_9, %c0_10] : memref<16x128xf32, #tpu.memory_space<vmem>>, vector<16x128xf32>
    %18 = arith.truncf %16 : vector<16x128xf32> to vector<16x128xbf16>
    %c0_11 = arith.constant 0 : index
    %c0_12 = arith.constant 0 : index
    %19 = vector.load %arg7[%c0_11, %c0_12] : memref<128x128xbf16, #tpu.memory_space<vmem>>, vector<128x128xbf16>
    %cst_13 = arith.constant dense<0.000000e+00> : vector<16x128xf32>
    %20 = tpu.matmul %18, %19, %cst_13 {dimension_numbers = #tpu.dot_dimension_numbers<[1], [0], [0], [1], [0, 0, 1, 1], [], []>} : vector<16x128xbf16>, vector<128x128xbf16>, vector<16x128xf32> -> vector<16x128xf32>
    %21 = arith.addf %17, %20 : vector<16x128xf32>
    %c0_14 = arith.constant 0 : index
    %c0_15 = arith.constant 0 : index
    %22 = vector.load %arg11[%c0_14, %c0_15] : memref<16x128xf32, #tpu.memory_space<vmem>>, vector<16x128xf32>
    tpu.vector_store %arg11[%c0_14, %c0_15], %21 {strides = array<i32>} : memref<16x128xf32, #tpu.memory_space<vmem>>, vector<16x128xf32>,
    %c1_i32 = arith.constant 1 : i32
    %23 = arith.cmpi eq, %arg1, %c1_i32 : i32
    %24 = arith.extui %23 : i1 to i32
    %c0_i32_16 = arith.constant 0 : i32
    %25 = arith.cmpi ne, %24, %c0_i32_16 : i32
    scf.if %25 {
      %c0_17 = arith.constant 0 : index
      %c0_18 = arith.constant 0 : index
      %26 = vector.load %arg11[%c0_17, %c0_18] : memref<16x128xf32, #tpu.memory_space<vmem>>, vector<16x128xf32>
      %c0_19 = arith.constant 0 : index
      %c0_20 = arith.constant 0 : index
      %27 = vector.load %arg8[%c0_19, %c0_20] : memref<1x128xf32, #tpu.memory_space<vmem>>, vector<1x128xf32>
      %28 = vector.broadcast %27 : vector<1x128xf32> to vector<16x128xf32>
      %29 = arith.addf %26, %28 : vector<16x128xf32>
      %c0_21 = arith.constant 0 : index
      %c0_22 = arith.constant 0 : index
      %30 = vector.load %arg9[%c0_21, %c0_22] : memref<16x128xf32, #tpu.memory_space<vmem>>, vector<16x128xf32>
      tpu.vector_store %arg9[%c0_21, %c0_22], %29 {strides = array<i32>} : memref<16x128xf32, #tpu.memory_space<vmem>>, vector<16x128xf32>,
    } else {
    }
    return
  }
  func.func @transform_0(%arg0: i32, %arg1: i32) -> (i32, i32) {
    %c0_i32 = arith.constant 0 : i32
    %c0_i32_0 = arith.constant 0 : i32
    return %arg0, %c0_i32 : i32, i32
  }
  func.func @transform_1(%arg0: i32, %arg1: i32) -> (i32, i32) {
    %c0_i32 = arith.constant 0 : i32
    %c0_i32_0 = arith.constant 0 : i32
    %c0_i32_1 = arith.constant 0 : i32
    return %c0_i32, %c0_i32_0 : i32, i32
  }
  func.func @transform_2(%arg0: i32, %arg1: i32) -> (i32, i32) {
    %c0_i32 = arith.constant 0 : i32
    %c0_i32_0 = arith.constant 0 : i32
    %c0_i32_1 = arith.constant 0 : i32
    return %c0_i32, %c0_i32_0 : i32, i32
  }
  func.func @transform_3(%arg0: i32, %arg1: i32) -> (i32, i32) {
    %c0_i32 = arith.constant 0 : i32
    %c0_i32_0 = arith.constant 0 : i32
    return %c0_i32, %arg1 : i32, i32
  }
  func.func @transform_4(%arg0: i32, %arg1: i32) -> (i32, i32) {
    %c0_i32 = arith.constant 0 : i32
    %c0_i32_0 = arith.constant 0 : i32
    return %c0_i32, %arg1 : i32, i32
  }
  func.func @transform_5(%arg0: i32, %arg1: i32) -> (i32, i32) {
    %c0_i32 = arith.constant 0 : i32
    %c0_i32_0 = arith.constant 0 : i32
    return %arg1, %c0_i32 : i32, i32
  }
  func.func @transform_6(%arg0: i32, %arg1: i32) -> (i32, i32) {
    %c0_i32 = arith.constant 0 : i32
    %c0_i32_0 = arith.constant 0 : i32
    %c0_i32_1 = arith.constant 0 : i32
    return %c0_i32, %c0_i32_0 : i32, i32
  }
  func.func @transform_7(%arg0: i32, %arg1: i32) -> (i32, i32) {
    %c0_i32 = arith.constant 0 : i32
    %c0_i32_0 = arith.constant 0 : i32
    return %arg0, %c0_i32 : i32, i32
  }
}

</mosaic_0001>

<llo_original>
// kernel: tpu_custom_call.1
$region0: #{tpu_custom_call.1}
  #allocation0 [shape = 'u32[]', space=smem, size = 0x4, offset = 0x4, fixed_abs, tag = 'smem constant byte address 0x4 - core index']
  #allocation1 [shape = 'u32[144,128]{1,0:T(1,128)}', space=vmem, size = 0x12000, scoped, tag = 'internal scratch']
  #allocation2 [shape = 'bf16[16,256]{1,0:T(16,128)(2,1)}', space=vmem, size = 0x2000, scoped, tag = 'scratch operand']
  #allocation3 [shape = 'f32[16,128]{1,0:T(8,128)}', space=vmem, size = 0x2000, scoped, tag = 'scratch operand']
  %s0 = inlined_call_operand.hbm [shape: bf16[32,256], index: 0, kind: input, shape index: {}]
  %s1 = inlined_call_operand.vmem [shape: f32[1,64], index: 1, kind: input, shape index: {}]
  %s2 = inlined_call_operand.vmem [shape: f32[1,64], index: 2, kind: input, shape index: {}]
  %s3 = inlined_call_operand.hbm [shape: bf16[256,256], index: 3, kind: input, shape index: {}]
  %s4 = inlined_call_operand.vmem [shape: f32[1,256], index: 4, kind: input, shape index: {}]
  %s5 = inlined_call_operand.hbm [shape: bf16[256,128], index: 5, kind: input, shape index: {}]
  %s6 = inlined_call_operand.vmem [shape: f32[1,128], index: 6, kind: input, shape index: {}]
  %s7 = inlined_call_operand.hbm [shape: f32[32,128], index: 7, kind: output, shape index: {}]
  %s8 = sld [smem:[#allocation0]]
  $region81: #{tpu_custom_call.1} parent=0
    _
  %s10 = ssub.s32 1, %s8
  %s11 = scalar_select 0, %s10, %s8
  $region1: #{tpu_custom_call.1} parent=0
    #allocation4 [shape = 'u8[16384]{0}', space=vmem, size = 0x4000, scoped, tag = 'input window, operand 0']
    #allocation5 [shape = 's32[2]{0}', space=sflag, size = 0x8, scoped, tag = 'scoped memory for tpu_custom_call.1']
    #allocation6 [shape = 's32[2]{0}', space=sflag, size = 0x8, scoped, tag = 'scoped memory for tpu_custom_call.1']
    #allocation7 [shape = 'u8[131072]{0}', space=vmem, size = 0x20000, scoped, tag = 'input window, operand 3']
    #allocation8 [shape = 's32[2]{0}', space=sflag, size = 0x8, scoped, tag = 'scoped memory for tpu_custom_call.1']
    #allocation9 [shape = 'u8[65536]{0}', space=vmem, size = 0x10000, scoped, tag = 'input window, operand 5']
    #allocation10 [shape = 'u8[16384]{0}', space=vmem, size = 0x4000, scoped, tag = 'output window, operand 0']
    %12 = vsyncpa [#allocation5], 0
    %s13 = scalar_lea.sflag [#allocation5], 1
    %14 = vsyncpa %s13, 0
    %15 = vsyncpa [#allocation8], 0
    %s16 = scalar_lea.sflag [#allocation8], 1
    %17 = vsyncpa %s16, 0
    %18 = vsyncpa [#allocation6], 0
    %s19 = scalar_lea.sflag [#allocation6], 1
    %20 = vsyncpa %s19, 0
    loop: start=0, step=1, limit=6
    $region2: #{tpu_custom_call.1} parent=1 // loop_pre_header
      _
    $region3: #{tpu_custom_call.1} parent=1 // loop_header
      %s22 = sphi 0, %s26
      %p23 = scmp.ge.s32.totalorder %s22, 6
      %s29 = sphi 0, %s41
      %s30 = sphi 0, %s37
      %s31 = sphi 0, %s29
      %s32 = sphi 0, %s30
      %s33 = sphi 0, %s31
      %s34 = sphi 0, %s32
      %s44 = sphi 0, %s46
      %s47 = sphi 0, %s44
      %s48 = sphi 0, %s47
      %s64 = sphi 0, %s48
      %s68 = sphi 0, %s68
      %s70 = sphi 0, %s68
      %s71 = sphi 0, %s70
      %s85 = sphi 0, %s71
      %s89 = sphi 0, %s89
      %s91 = sphi 0, %s89
      %s92 = sphi 0, %s91
      %s106 = sphi 0, %s92
      %s112 = sphi 0, %s114
      %s115 = sphi 0, %s112
      %s116 = sphi 0, %s115
      %s132 = sphi 0, %s116
      %s138 = sphi 0, %s140
      %s141 = sphi 0, %s138
      %s142 = sphi 0, %s141
      %s158 = sphi 0, %s142
      %s164 = sphi 0, %s166
      %s167 = sphi 0, %s164
      %s168 = sphi 0, %s167
      %s184 = sphi 0, %s168
      %s188 = sphi 0, %s188
      %s190 = sphi 0, %s188
      %s191 = sphi 0, %s190
      %s205 = sphi 0, %s191
      %s211 = sphi 0, %s213
      %s214 = sphi 0, %s211
      %s215 = sphi 0, %s214
      %s231 = sphi 0, %s215
    $region4: #{tpu_custom_call.1} parent=1 // loop_header_branch
      %25 = sbr.rel (%p23) target = $region8
    $region5: #{tpu_custom_call.1} parent=1 // loop_body
      %s27 = ssub.s32 %s22, 1
      %s28 = ssub.s32 %s22, 2
      %s35 = sadd.s32 1, %s30
      %p36 = scmp.ge.s32.totalorder %s35, 2
      %s37 = scalar_select %p36, 0, %s35
      %s38 = sadd.s32 1, %s29
      %s39 = scalar_select %p36, %s38, %s29
      %p40 = scmp.ge.s32.totalorder %s39, 2
      %s41 = scalar_select %p40, 0, %s39
      %s42 = ssub.s32 %s29, %s41
      %p43 = scmp.eq.s32.totalorder %s42, 0
      %s45 = sadd.s32 %s44, 1
      %s46 = scalar_select %p43, %s44, %s45
      %p49 = pneg %p43
      %p50 = scmp.eq.s32.totalorder %s22, 3
      %p51 = por %p49, %p50
      %p52 = scmp.ne.s32.totalorder %s44, %s47
      %p53 = scmp.eq.s32.totalorder %s22, 0
      %p54 = por %p52, %p53
      %p55 = scmp.ne.s32.totalorder %s44, %s47
      %p56 = scmp.eq.s32.totalorder %s27, 3
      %p57 = por %p55, %p56
      %p58 = scmp.ne.s32.totalorder %s47, %s48
      %p59 = scmp.eq.s32.totalorder %s27, 0
      %p60 = por %p58, %p59
      %p61 = scmp.ne.s32.totalorder %s47, %s48
      %p62 = scmp.eq.s32.totalorder %s28, 3
      %p63 = por %p61, %p62
      %p65 = scmp.ne.s32.totalorder %s48, %s64
      %p66 = scmp.eq.s32.totalorder %s28, 0
      %p67 = por %p65, %p66
      %s69 = sadd.s32 %s68, 1
      %p72 = scmp.eq.s32.totalorder %s22, 3
      %p73 = scmp.ne.s32.totalorder %s68, %s70
      %p74 = scmp.eq.s32.totalorder %s22, 0
      %p75 = por %p73, %p74
      %p76 = scmp.ne.s32.totalorder %s68, %s70
      %p77 = scmp.eq.s32.totalorder %s27, 3
      %p78 = por %p76, %p77
      %p79 = scmp.ne.s32.totalorder %s70, %s71
      %p80 = scmp.eq.s32.totalorder %s27, 0
      %p81 = por %p79, %p80
      %p82 = scmp.ne.s32.totalorder %s70, %s71
      %p83 = scmp.eq.s32.totalorder %s28, 3
      %p84 = por %p82, %p83
      %p86 = scmp.ne.s32.totalorder %s71, %s85
      %p87 = scmp.eq.s32.totalorder %s28, 0
      %p88 = por %p86, %p87
      %s90 = sadd.s32 %s89, 1
      %p93 = scmp.eq.s32.totalorder %s22, 3
      %p94 = scmp.ne.s32.totalorder %s89, %s91
      %p95 = scmp.eq.s32.totalorder %s22, 0
      %p96 = por %p94, %p95
      %p97 = scmp.ne.s32.totalorder %s89, %s91
      %p98 = scmp.eq.s32.totalorder %s27, 3
      %p99 = por %p97, %p98
      %p100 = scmp.ne.s32.totalorder %s91, %s92
      %p101 = scmp.eq.s32.totalorder %s27, 0
      %p102 = por %p100, %p101
      %p103 = scmp.ne.s32.totalorder %s91, %s92
      %p104 = scmp.eq.s32.totalorder %s28, 3
      %p105 = por %p103, %p104
      %p107 = scmp.ne.s32.totalorder %s92, %s106
      %p108 = scmp.eq.s32.totalorder %s28, 0
      %p109 = por %p107, %p108
      %s110 = ssub.s32 %s30, %s37
      %p111 = scmp.eq.s32.totalorder %s110, 0
      %s113 = sadd.s32 %s112, 1
      %s114 = scalar_select %p111, %s112, %s113
      %p117 = pneg %p111
      %p118 = scmp.eq.s32.totalorder %s22, 3
      %p119 = por %p117, %p118
      %p120 = scmp.ne.s32.totalorder %s112, %s115
      %p121 = scmp.eq.s32.totalorder %s22, 0
      %p122 = por %p120, %p121
      %p123 = scmp.ne.s32.totalorder %s112, %s115
      %p124 = scmp.eq.s32.totalorder %s27, 3
      %p125 = por %p123, %p124
      %p126 = scmp.ne.s32.totalorder %s115, %s116
      %p127 = scmp.eq.s32.totalorder %s27, 0
      %p128 = por %p126, %p127
      %p129 = scmp.ne.s32.totalorder %s115, %s116
      %p130 = scmp.eq.s32.totalorder %s28, 3
      %p131 = por %p129, %p130
      %p133 = scmp.ne.s32.totalorder %s116, %s132
      %p134 = scmp.eq.s32.totalorder %s28, 0
      %p135 = por %p133, %p134
      %s136 = ssub.s32 %s30, %s37
      %p137 = scmp.eq.s32.totalorder %s136, 0
      %s139 = sadd.s32 %s138, 1
      %s140 = scalar_select %p137, %s138, %s139
      %p143 = pneg %p137
      %p144 = scmp.eq.s32.totalorder %s22, 3
      %p145 = por %p143, %p144
      %p146 = scmp.ne.s32.totalorder %s138, %s141
      %p147 = scmp.eq.s32.totalorder %s22, 0
      %p148 = por %p146, %p147
      %p149 = scmp.ne.s32.totalorder %s138, %s141
      %p150 = scmp.eq.s32.totalorder %s27, 3
      %p151 = por %p149, %p150
      %p152 = scmp.ne.s32.totalorder %s141, %s142
      %p153 = scmp.eq.s32.totalorder %s27, 0
      %p154 = por %p152, %p153
      %p155 = scmp.ne.s32.totalorder %s141, %s142
      %p156 = scmp.eq.s32.totalorder %s28, 3
      %p157 = por %p155, %p156
      %p159 = scmp.ne.s32.totalorder %s142, %s158
      %p160 = scmp.eq.s32.totalorder %s28, 0
      %p161 = por %p159, %p160
      %s162 = ssub.s32 %s30, %s37
      %p163 = scmp.eq.s32.totalorder %s162, 0
      %s165 = sadd.s32 %s164, 1
      %s166 = scalar_select %p163, %s164, %s165
      %p169 = pneg %p163
      %p170 = scmp.eq.s32.totalorder %s22, 3
      %p171 = por %p169, %p170
      %p172 = scmp.ne.s32.totalorder %s164, %s167
      %p173 = scmp.eq.s32.totalorder %s22, 0
      %p174 = por %p172, %p173
      %p175 = scmp.ne.s32.totalorder %s164, %s167
      %p176 = scmp.eq.s32.totalorder %s27, 3
      %p177 = por %p175, %p176
      %p178 = scmp.ne.s32.totalorder %s167, %s168
      %p179 = scmp.eq.s32.totalorder %s27, 0
      %p180 = por %p178, %p179
      %p181 = scmp.ne.s32.totalorder %s167, %s168
      %p182 = scmp.eq.s32.totalorder %s28, 3
      %p183 = por %p181, %p182
      %p185 = scmp.ne.s32.totalorder %s168, %s184
      %p186 = scmp.eq.s32.totalorder %s28, 0
      %p187 = por %p185, %p186
      %s189 = sadd.s32 %s188, 1
      %p192 = scmp.eq.s32.totalorder %s22, 3
      %p193 = scmp.ne.s32.totalorder %s188, %s190
      %p194 = scmp.eq.s32.totalorder %s22, 0
      %p195 = por %p193, %p194
      %p196 = scmp.ne.s32.totalorder %s188, %s190
      %p197 = scmp.eq.s32.totalorder %s27, 3
      %p198 = por %p196, %p197
      %p199 = scmp.ne.s32.totalorder %s190, %s191
      %p200 = scmp.eq.s32.totalorder %s27, 0
      %p201 = por %p199, %p200
      %p202 = scmp.ne.s32.totalorder %s190, %s191
      %p203 = scmp.eq.s32.totalorder %s28, 3
      %p204 = por %p202, %p203
      %p206 = scmp.ne.s32.totalorder %s191, %s205
      %p207 = scmp.eq.s32.totalorder %s28, 0
      %p208 = por %p206, %p207
      %s209 = ssub.s32 %s29, %s41
      %p210 = scmp.eq.s32.totalorder %s209, 0
      %s212 = sadd.s32 %s211, 1
      %s213 = scalar_select %p210, %s211, %s212
      %p216 = pneg %p210
      %p217 = scmp.eq.s32.totalorder %s22, 3
      %p218 = por %p216, %p217
      %p219 = scmp.ne.s32.totalorder %s211, %s214
      %p220 = scmp.eq.s32.totalorder %s22, 0
      %p221 = por %p219, %p220
      %p222 = scmp.ne.s32.totalorder %s211, %s214
      %p223 = scmp.eq.s32.totalorder %s27, 3
      %p224 = por %p222, %p223
      %p225 = scmp.ne.s32.totalorder %s214, %s215
      %p226 = scmp.eq.s32.totalorder %s27, 0
      %p227 = por %p225, %p226
      %p228 = scmp.ne.s32.totalorder %s214, %s215
      %p229 = scmp.eq.s32.totalorder %s28, 3
      %p230 = por %p228, %p229
      %p232 = scmp.ne.s32.totalorder %s215, %s231
      %p233 = scmp.eq.s32.totalorder %s28, 0
      %p234 = por %p232, %p233
      %p235 = scmp.le.s32.totalorder 1, %s22
      %p236 = scmp.lt.s32.totalorder %s22, 5
      %p237 = pnand %p235, %p236
      %p238 = pneg %p237
      // Predicated region
      $region9: #{tpu_custom_call.1} parent=5 // pred_check
        _
      $region10: #{tpu_custom_call.1} parent=5 // pred_check_branch
        %240 = sbr.rel (%p237) target = $region12
      $region11: #{tpu_custom_call.1} parent=5 // pred_region
        %s241 = ssub.s32 %s22, 1
        // Predicated region
        $region13: #{tpu_custom_call.1} parent=11 // pred_check
          %p242 = pneg %p81
        $region14: #{tpu_custom_call.1} parent=11 // pred_check_branch
          %244 = sbr.rel (%p242) target = $region16
        $region15: #{tpu_custom_call.1} parent=11 // pred_region
          _
        $region16: #{tpu_custom_call.1} parent=11 // pred_fallthru
          _
        // Predicated region
        $region17: #{tpu_custom_call.1} parent=11 // pred_check
          %p245 = pneg %p102
        $region18: #{tpu_custom_call.1} parent=11 // pred_check_branch
          %247 = sbr.rel (%p245) target = $region20
        $region19: #{tpu_custom_call.1} parent=11 // pred_region
          _
        $region20: #{tpu_custom_call.1} parent=11 // pred_fallthru
          _
        // Predicated region
        $region21: #{tpu_custom_call.1} parent=11 // pred_check
          %p248 = pneg %p201
        $region22: #{tpu_custom_call.1} parent=11 // pred_check_branch
          %250 = sbr.rel (%p248) target = $region24
        $region23: #{tpu_custom_call.1} parent=11 // pred_region
          _
        $region24: #{tpu_custom_call.1} parent=11 // pred_fallthru
          _
      $region12: #{tpu_custom_call.1} parent=5 // pred_fallthru
        _
      %p251 = scmp.lt.s32.totalorder %s22, 4
      // Predicated region
      $region25: #{tpu_custom_call.1} parent=5 // pred_check
        %p252 = pneg %p251
      $region26: #{tpu_custom_call.1} parent=5 // pred_check_branch
        %254 = sbr.rel (%p252) target = $region28
      $region27: #{tpu_custom_call.1} parent=5 // pred_region
        // Predicated region
        $region29: #{tpu_custom_call.1} parent=27 // pred_check
          %p255 = pneg %p54
        $region30: #{tpu_custom_call.1} parent=27 // pred_check_branch
          %257 = sbr.rel (%p255) target = $region32
        $region31: #{tpu_custom_call.1} parent=27 // pred_region
          %s258 = sand.u32 %s44, 1
          %s259 = scalar_lea.sflag [#allocation5], %s258
          %s260 = sand.u32 %s44, 1
          %s261 = smul.addr %s260, 16
          %s262 = scalar_lea.vmem [#allocation4], %s261
          %s263 = smul.u32 2, %s29
          %s265 = ssub.s32 256, 256
          %266 = vsyncadd %s259, %s265
          %s267 = smul.addr %s263, 2
          %s268 = smul.addr %s267, 64
          %s269 = scalar_lea.hbm %s0, %s268
          %s270 = sshll.u32 %s262, 4
          %s271 = int_to_ptr.vmem [resolvable:$true] %s270
          %276 = dma.hbm_to_vmem [thread:$0]  %s269, 256, %s271, %s259, 128, 128, 8
        $region32: #{tpu_custom_call.1} parent=27 // pred_fallthru
          _
        // Predicated region
        $region33: #{tpu_custom_call.1} parent=27 // pred_check
          %p277 = pneg %p122
        $region34: #{tpu_custom_call.1} parent=27 // pred_check_branch
          %279 = sbr.rel (%p277) target = $region36
        $region35: #{tpu_custom_call.1} parent=27 // pred_region
          %s280 = sand.u32 %s22, 1
          %s281 = scalar_lea.sflag [#allocation8], %s280
          %s282 = sand.u32 %s112, 1
          %s283 = smul.addr %s282, 128
          %s284 = scalar_lea.vmem [#allocation7], %s283
          %s286 = ssub.s32 2048, 2048
          %287 = vsyncadd %s281, %s286
          %s288 = smul.addr %s30, 64
          %s289 = scalar_lea.hbm %s3, %s288
          %s290 = sshll.u32 %s284, 4
          %s291 = int_to_ptr.vmem [resolvable:$true] %s290
          %296 = dma.hbm_to_vmem [thread:$0]  %s289, 2048, %s291, %s281, 128, 64, 4
        $region36: #{tpu_custom_call.1} parent=27 // pred_fallthru
          _
        // Predicated region
        $region37: #{tpu_custom_call.1} parent=27 // pred_check
          %p297 = pneg %p148
        $region38: #{tpu_custom_call.1} parent=27 // pred_check_branch
          %299 = sbr.rel (%p297) target = $region40
        $region39: #{tpu_custom_call.1} parent=27 // pred_region
          %p300 = scmp.lt.s32.totalorder %s30, 1
          %s301 = scalar_select %p300, %s30, 1
          %s302 = scalar_lea.vmem %s4, %s301
        $region40: #{tpu_custom_call.1} parent=27 // pred_fallthru
          _
        // Predicated region
        $region41: #{tpu_custom_call.1} parent=27 // pred_check
          %p303 = pneg %p174
        $region42: #{tpu_custom_call.1} parent=27 // pred_check_branch
          %305 = sbr.rel (%p303) target = $region44
        $region43: #{tpu_custom_call.1} parent=27 // pred_region
          %s306 = sand.u32 %s22, 1
          %s307 = scalar_lea.sflag [#allocation8], %s306
          %s308 = sand.u32 %s164, 1
          %s309 = smul.addr %s308, 64
          %s310 = scalar_lea.vmem [#allocation9], %s309
          %s311 = smul.u32 16, %s30
          %s313 = ssub.s32 1024, 1024
          %314 = vsyncadd %s307, %s313
          %s315 = smul.addr %s311, 64
          %s316 = scalar_lea.hbm %s5, %s315
          %s317 = sshll.u32 %s310, 4
          %s318 = int_to_ptr.vmem [resolvable:$true] %s317
          %323 = dma.hbm_to_vmem [thread:$0]  %s316, 1024, %s318, %s307, 64, 64, 4
        $region44: #{tpu_custom_call.1} parent=27 // pred_fallthru
          _
      $region28: #{tpu_custom_call.1} parent=5 // pred_fallthru
        _
      %p324 = scmp.le.s32.totalorder 1, %s22
      %p325 = scmp.lt.s32.totalorder %s22, 5
      %p326 = pnand %p324, %p325
      %p327 = pneg %p326
      // Predicated region
      $region45: #{tpu_custom_call.1} parent=5 // pred_check
        _
      $region46: #{tpu_custom_call.1} parent=5 // pred_check_branch
        %329 = sbr.rel (%p326) target = $region48
      $region47: #{tpu_custom_call.1} parent=5 // pred_region
        %s330 = ssub.s32 %s22, 1
        %s331 = sand.u32 %s47, 1
        %s332 = scalar_lea.sflag [#allocation5], %s331
        %s333 = sand.u32 %s47, 1
        %s334 = smul.addr %s333, 16
        %s335 = scalar_lea.vmem [#allocation4], %s334
        // Predicated region
        $region49: #{tpu_custom_call.1} parent=47 // pred_check
          %p336 = pneg %p60
        $region50: #{tpu_custom_call.1} parent=47 // pred_check_branch
          %338 = sbr.rel (%p336) target = $region52
        $region51: #{tpu_custom_call.1} parent=47 // pred_region
          %339 = dma.done %s332, 256
        $region52: #{tpu_custom_call.1} parent=47 // pred_fallthru
          _
        %s340 = sand.u32 %s27, 1
        %s341 = scalar_lea.sflag [#allocation8], %s340
        %s342 = sand.u32 %s115, 1
        %s343 = smul.addr %s342, 128
        %s344 = scalar_lea.vmem [#allocation7], %s343
        // Predicated region
        $region53: #{tpu_custom_call.1} parent=47 // pred_check
          %p345 = pneg %p128
        $region54: #{tpu_custom_call.1} parent=47 // pred_check_branch
          %347 = sbr.rel (%p345) target = $region56
        $region55: #{tpu_custom_call.1} parent=47 // pred_region
          %348 = dma.done %s341, 2048
        $region56: #{tpu_custom_call.1} parent=47 // pred_fallthru
          _
        %s349 = sand.u32 %s27, 1
        %s350 = scalar_lea.sflag [#allocation8], %s349
        %s351 = sand.u32 %s167, 1
        %s352 = smul.addr %s351, 64
        %s353 = scalar_lea.vmem [#allocation9], %s352
        // Predicated region
        $region57: #{tpu_custom_call.1} parent=47 // pred_check
          %p354 = pneg %p180
        $region58: #{tpu_custom_call.1} parent=47 // pred_check_branch
          %356 = sbr.rel (%p354) target = $region60
        $region59: #{tpu_custom_call.1} parent=47 // pred_region
          %357 = dma.done %s350, 1024
        $region60: #{tpu_custom_call.1} parent=47 // pred_fallthru
          _
        %s358 = sand.u32 %s47, 1
        %s359 = scalar_lea.sflag [#allocation5], %s358
        %s360 = sand.u32 %s47, 1
        %s361 = smul.addr %s360, 16
        %s362 = scalar_lea.vmem [#allocation4], %s361
        %p363 = pneg %p60
        %p364 = pneg %p57
        %p365 = pneg %p81
        %p366 = pneg %p78
        %p367 = pneg %p102
        %p368 = pneg %p99
        %s369 = sand.u32 %s27, 1
        %s370 = scalar_lea.sflag [#allocation8], %s369
        %s371 = sand.u32 %s115, 1
        %s372 = smul.addr %s371, 128
        %s373 = scalar_lea.vmem [#allocation7], %s372
        %p374 = pneg %p128
        %p375 = pneg %p125
        %p376 = scmp.lt.s32.totalorder %s32, 1
        %s377 = scalar_select %p376, %s32, 1
        %s378 = scalar_lea.vmem %s4, %s377
        %p379 = pneg %p154
        %p380 = pneg %p151
        %s381 = sand.u32 %s27, 1
        %s382 = scalar_lea.sflag [#allocation8], %s381
        %s383 = sand.u32 %s167, 1
        %s384 = smul.addr %s383, 64
        %s385 = scalar_lea.vmem [#allocation9], %s384
        %p386 = pneg %p180
        %p387 = pneg %p177
        %p388 = pneg %p201
        %p389 = pneg %p198
        %p390 = pneg %p227
        %p391 = pneg %p224
        %s392 = sand.u32 %s214, 1
        %s393 = scalar_lea.sflag [#allocation6], %s392
        %s394 = sand.u32 %s214, 1
        %s395 = smul.addr %s394, 16
        %s396 = scalar_lea.vmem [#allocation10], %s395
        %s397 = smul.u32 2, %s31
        %p398 = scmp.lt.s32.totalorder %s32, 1
        %s399 = scalar_select %p398, %s32, 1
        %s400 = scalar_lea.vmem %s4, %s399
        %s401 = smul.u32 16, %s32
        %s402 = smul.u32 2, %s31
        %p404 = scmp.eq.s32.totalorder %s32, 0
        // Predicated region
        $region61: #{tpu_custom_call.1} parent=47 // pred_check
          %p405 = pneg %p404
        $region62: #{tpu_custom_call.1} parent=47 // pred_check_branch
          %407 = sbr.rel (%p405) target = $region64
        $region63: #{tpu_custom_call.1} parent=47 // pred_region
          %v408 = vld [vmem:[%s335] sm:$0xff]
          %v409 = vld [vmem:[%s335 + $0x8] sm:$0xff]
          %v410 = vld [vmem:[%s1] sm:$0x1]
          %v411 = vld [vmem:[%s2] sm:$0x1]
          %v412 = vunpack.c.l.bf16 %v408
          %v413 = vunpack.c.l.bf16 %v409
          %vm414 = vcmask 523264
          %v415 = vsel %vm414, %v412, 0.0
          %416 = vadd.xlane.f32.xlu0 %v415
          %v417 = vpop.xlane.xlu0 %416
          %v418 = vsel %vm414, %v413, 0.0
          %419 = vadd.xlane.f32.xlu0 %v418
          %v420 = vpop.xlane.xlu0 %419
          %v421 = vmul.f32 %v417, 0.015625
          %v422 = vmul.f32 %v420, 0.015625
          %v423 = vsub.f32 %v412, %v421
          %v424 = vsub.f32 %v413, %v422
          %v425 = vmul.f32 %v423, %v423
          %v426 = vmul.f32 %v424, %v424
          %v427 = vsel %vm414, %v425, 0.0
          %428 = vadd.xlane.f32.xlu0 %v427
          %v429 = vpop.xlane.xlu0 %428
          %v430 = vsel %vm414, %v426, 0.0
          %431 = vadd.xlane.f32.xlu0 %v430
          %v432 = vpop.xlane.xlu0 %431
          %v433 = vmul.f32 %v429, 0.015625
          %v434 = vmul.f32 %v432, 0.015625
          %v435 = vadd.f32 %v433, 1e-05
          %v436 = vadd.f32 %v434, 1e-05
          %v437 = vrsqrt.pop %v435
          %v438 = vrsqrt.pop %v436
          %v439 = vmul.f32 %v423, %v437
          %v440 = vmul.f32 %v424, %v438
          %v442 = vlaneseq
          %v443 = vshrl.u32 %v442, 7
          %v444 = vsub.s32 0, %v443
          %v445 = vrot.slane %v410, %v444
          %v447 = vmul.f32 %v439, %v445
          %v448 = vmul.f32 %v440, %v445
          %v450 = vlaneseq
          %v451 = vshrl.u32 %v450, 7
          %v452 = vsub.s32 0, %v451
          %v453 = vrot.slane %v411, %v452
          %v455 = vadd.f32 %v447, %v453
          %v456 = vadd.f32 %v448, %v453
          %v457 = vpack.c.bf16 %v456, %v455
          %460 = vrot.lane.b32.xlu0 %v412, 64
          %v461 = vpop.permute.xlu0 %460
          %462 = vrot.lane.b32.xlu0 %v413, 64
          %v463 = vpop.permute.xlu0 %462
          %v466 = vsel %vm414, %v461, 0.0
          %467 = vadd.xlane.f32.xlu0 %v466
          %v468 = vpop.xlane.xlu0 %467
          %v469 = vsel %vm414, %v463, 0.0
          %470 = vadd.xlane.f32.xlu0 %v469
          %v471 = vpop.xlane.xlu0 %470
          %v472 = vmul.f32 %v468, 0.015625
          %v473 = vmul.f32 %v471, 0.015625
          %v474 = vsub.f32 %v412, %v472
          %v475 = vsub.f32 %v413, %v473
          %v476 = vmul.f32 %v474, %v474
          %v477 = vmul.f32 %v475, %v475
          %480 = vrot.lane.b32.xlu0 %v476, 64
          %v481 = vpop.permute.xlu0 %480
          %482 = vrot.lane.b32.xlu0 %v477, 64
          %v483 = vpop.permute.xlu0 %482
          %v486 = vsel %vm414, %v481, 0.0
          %487 = vadd.xlane.f32.xlu0 %v486
          %v488 = vpop.xlane.xlu0 %487
          %v489 = vsel %vm414, %v483, 0.0
          %490 = vadd.xlane.f32.xlu0 %v489
          %v491 = vpop.xlane.xlu0 %490
          %v492 = vmul.f32 %v488, 0.015625
          %v493 = vmul.f32 %v491, 0.015625
          %v494 = vadd.f32 %v492, 1e-05
          %v495 = vadd.f32 %v493, 1e-05
          %v496 = vrsqrt.pop %v494
          %v497 = vrsqrt.pop %v495
          %v498 = vmul.f32 %v474, %v496
          %v499 = vmul.f32 %v475, %v497
          %500 = vrot.lane.b32.xlu0 %v445, 64
          %v501 = vpop.permute.xlu0 %500
          %v503 = vmul.f32 %v498, %v501
          %v504 = vmul.f32 %v499, %v501
          %505 = vrot.lane.b32.xlu0 %v453, 64
          %v506 = vpop.permute.xlu0 %505
          %v508 = vadd.f32 %v503, %v506
          %v509 = vadd.f32 %v504, %v506
          %v510 = vpack.c.bf16 %v509, %v508
          %v513 = vrot.slane %v408, 4
          %v514 = vrot.slane %v409, 4
          %v517 = vunpack.c.l.bf16 %v513
          %v518 = vunpack.c.l.bf16 %v514
          %v519 = vsel %vm414, %v517, 0.0
          %520 = vadd.xlane.f32.xlu0 %v519
          %v521 = vpop.xlane.xlu0 %520
          %v522 = vsel %vm414, %v518, 0.0
          %523 = vadd.xlane.f32.xlu0 %v522
          %v524 = vpop.xlane.xlu0 %523
          %v525 = vmul.f32 %v521, 0.015625
          %v526 = vmul.f32 %v524, 0.015625
          %v527 = vsub.f32 %v517, %v525
          %v528 = vsub.f32 %v518, %v526
          %v529 = vmul.f32 %v527, %v527
          %v530 = vmul.f32 %v528, %v528
          %v531 = vsel %vm414, %v529, 0.0
          %532 = vadd.xlane.f32.xlu0 %v531
          %v533 = vpop.xlane.xlu0 %532
          %v534 = vsel %vm414, %v530, 0.0
          %535 = vadd.xlane.f32.xlu0 %v534
          %v536 = vpop.xlane.xlu0 %535
          %v537 = vmul.f32 %v533, 0.015625
          %v538 = vmul.f32 %v536, 0.015625
          %v539 = vadd.f32 %v537, 1e-05
          %v540 = vadd.f32 %v538, 1e-05
          %v541 = vrsqrt.pop %v539
          %v542 = vrsqrt.pop %v540
          %v543 = vmul.f32 %v527, %v541
          %v544 = vmul.f32 %v528, %v542
          %v545 = vmul.f32 %v543, %v445
          %v546 = vmul.f32 %v544, %v445
          %v547 = vadd.f32 %v545, %v453
          %v548 = vadd.f32 %v546, %v453
          %v549 = vpack.c.bf16 %v548, %v547
          %550 = vrot.lane.b32.xlu0 %v408, 64
          %v551 = vpop.permute.xlu0 %550
          %552 = vrot.lane.b32.xlu0 %v409, 64
          %v553 = vpop.permute.xlu0 %552
          %v554 = vrot.slane %v551, 4
          %v555 = vrot.slane %v553, 4
          %v558 = vunpack.c.l.bf16 %v554
          %v559 = vunpack.c.l.bf16 %v555
          %v560 = vsel %vm414, %v558, 0.0
          %561 = vadd.xlane.f32.xlu0 %v560
          %v562 = vpop.xlane.xlu0 %561
          %v563 = vsel %vm414, %v559, 0.0
          %564 = vadd.xlane.f32.xlu0 %v563
          %v565 = vpop.xlane.xlu0 %564
          %v566 = vmul.f32 %v562, 0.015625
          %v567 = vmul.f32 %v565, 0.015625
          %v568 = vsub.f32 %v558, %v566
          %v569 = vsub.f32 %v559, %v567
          %v570 = vmul.f32 %v568, %v568
          %v571 = vmul.f32 %v569, %v569
          %v572 = vsel %vm414, %v570, 0.0
          %573 = vadd.xlane.f32.xlu0 %v572
          %v574 = vpop.xlane.xlu0 %573
          %v575 = vsel %vm414, %v571, 0.0
          %576 = vadd.xlane.f32.xlu0 %v575
          %v577 = vpop.xlane.xlu0 %576
          %v578 = vmul.f32 %v574, 0.015625
          %v579 = vmul.f32 %v577, 0.015625
          %v580 = vadd.f32 %v578, 1e-05
          %v581 = vadd.f32 %v579, 1e-05
          %v582 = vrsqrt.pop %v580
          %v583 = vrsqrt.pop %v581
          %v584 = vmul.f32 %v568, %v582
          %v585 = vmul.f32 %v569, %v583
          %v586 = vmul.f32 %v584, %v445
          %v587 = vmul.f32 %v585, %v445
          %v588 = vadd.f32 %v586, %v453
          %v589 = vadd.f32 %v587, %v453
          %v590 = vpack.c.bf16 %v589, %v588
          %592 = vrot.lane.b32.xlu0 %v590, 64
          %v593 = vpop.permute.xlu0 %592
          %v596 = vsel %vm414, %v457, %v510
          %v600 = vsel %vm414, %v549, %v593
          %602 = vst [vmem:[#allocation2] sm:$0xff] %v596
          %603 = vst [vmem:[#allocation2 + $0x8] sm:$0xff] %v600
          %604 = vst [vmem:[#allocation3] sm:$0xff] 0.0
          %605 = vst [vmem:[#allocation3 + $0x8] sm:$0xff] 0.0
        $region64: #{tpu_custom_call.1} parent=47 // pred_fallthru
          _
        %v606 = vld [vmem:[#allocation2] sm:$0xff]
        %v607 = vld [vmem:[#allocation2 + $0x8] sm:$0xff]
        %v608 = vld [vmem:[%s344] sm:$0xf]
        %v609 = vld [vmem:[%s344 + $0x4] sm:$0xf]
        %v610 = vld [vmem:[%s344 + $0x8] sm:$0xf]
        %v611 = vld [vmem:[%s344 + $0xc] sm:$0xf]
        %v612 = vld [vmem:[%s344 + $0x10] sm:$0xf]
        %v613 = vld [vmem:[%s344 + $0x14] sm:$0xf]
        %v614 = vld [vmem:[%s344 + $0x18] sm:$0xf]
        %v615 = vld [vmem:[%s344 + $0x1c] sm:$0xf]
        %v616 = vld [vmem:[%s344 + $0x20] sm:$0xf]
        %v617 = vld [vmem:[%s344 + $0x24] sm:$0xf]
        %v618 = vld [vmem:[%s344 + $0x28] sm:$0xf]
        %v619 = vld [vmem:[%s344 + $0x2c] sm:$0xf]
        %v620 = vld [vmem:[%s344 + $0x30] sm:$0xf]
        %v621 = vld [vmem:[%s344 + $0x34] sm:$0xf]
        %v622 = vld [vmem:[%s344 + $0x38] sm:$0xf]
        %v623 = vld [vmem:[%s344 + $0x3c] sm:$0xf]
        %v624 = vld [vmem:[%s344 + $0x40] sm:$0xf]
        %v625 = vld [vmem:[%s344 + $0x44] sm:$0xf]
        %v626 = vld [vmem:[%s344 + $0x48] sm:$0xf]
        %v627 = vld [vmem:[%s344 + $0x4c] sm:$0xf]
        %v628 = vld [vmem:[%s344 + $0x50] sm:$0xf]
        %v629 = vld [vmem:[%s344 + $0x54] sm:$0xf]
        %v630 = vld [vmem:[%s344 + $0x58] sm:$0xf]
        %v631 = vld [vmem:[%s344 + $0x5c] sm:$0xf]
        %v632 = vld [vmem:[%s344 + $0x60] sm:$0xf]
        %v633 = vld [vmem:[%s344 + $0x64] sm:$0xf]
        %v634 = vld [vmem:[%s344 + $0x68] sm:$0xf]
        %v635 = vld [vmem:[%s344 + $0x6c] sm:$0xf]
        %v636 = vld [vmem:[%s344 + $0x70] sm:$0xf]
        %v637 = vld [vmem:[%s344 + $0x74] sm:$0xf]
        %v638 = vld [vmem:[%s344 + $0x78] sm:$0xf]
        %v639 = vld [vmem:[%s344 + $0x7c] sm:$0xf]
        %v640 = vld [vmem:[%s400] sm:$0x1]
        %v642 = vlaneseq
        %v643 = vshrl.u32 %v642, 7
        %v644 = vsub.s32 0, %v643
        %v645 = vrot.slane %v640, %v644
        %v679 = vunpack.c.l.b16 %v608
        %v680 = vunpack.c.l.b16 %v609
        %v681 = vunpack.c.l.b16 %v610
        %v682 = vunpack.c.l.b16 %v611
        %v683 = vunpack.c.l.b16 %v612
        %v684 = vunpack.c.l.b16 %v613
        %v685 = vunpack.c.l.b16 %v614
        %v686 = vunpack.c.l.b16 %v615
        %v687 = vunpack.c.l.b16 %v616
        %v688 = vunpack.c.l.b16 %v617
        %v689 = vunpack.c.l.b16 %v618
        %v690 = vunpack.c.l.b16 %v619
        %v691 = vunpack.c.l.b16 %v620
        %v692 = vunpack.c.l.b16 %v621
        %v693 = vunpack.c.l.b16 %v622
        %v694 = vunpack.c.l.b16 %v623
        %v695 = vunpack.c.l.b16 %v624
        %v696 = vunpack.c.l.b16 %v625
        %v697 = vunpack.c.l.b16 %v626
        %v698 = vunpack.c.l.b16 %v627
        %v699 = vunpack.c.l.b16 %v628
        %v700 = vunpack.c.l.b16 %v629
        %v701 = vunpack.c.l.b16 %v630
        %v702 = vunpack.c.l.b16 %v631
        %v703 = vunpack.c.l.b16 %v632
        %v704 = vunpack.c.l.b16 %v633
        %v705 = vunpack.c.l.b16 %v634
        %v706 = vunpack.c.l.b16 %v635
        %v707 = vunpack.c.l.b16 %v636
        %v708 = vunpack.c.l.b16 %v637
        %v709 = vunpack.c.l.b16 %v638
        %v710 = vunpack.c.l.b16 %v639
        %v711 = vpack.c.b16 %v680, %v679
        %v712 = vpack.c.b16 %v682, %v681
        %v713 = vpack.c.b16 %v684, %v683
        %v714 = vpack.c.b16 %v686, %v685
        %v715 = vpack.c.b16 %v688, %v687
        %v716 = vpack.c.b16 %v690, %v689
        %v717 = vpack.c.b16 %v692, %v691
        %v718 = vpack.c.b16 %v694, %v693
        %v719 = vpack.c.b16 %v696, %v695
        %v720 = vpack.c.b16 %v698, %v697
        %v721 = vpack.c.b16 %v700, %v699
        %v722 = vpack.c.b16 %v702, %v701
        %v723 = vpack.c.b16 %v704, %v703
        %v724 = vpack.c.b16 %v706, %v705
        %v725 = vpack.c.b16 %v708, %v707
        %v726 = vpack.c.b16 %v710, %v709
        %743 = vmatprep.subr.bf16.mxu0 0
        %744 = vmatpush1.bf16.msra.mxu0 %v711
        %745 = vmatprep.subr.bf16.mxu0 0
        %746 = vmatpush1.bf16.msra.mxu0 %v712
        %747 = vmatprep.subr.bf16.mxu0 0
        %748 = vmatpush1.bf16.msra.mxu0 %v713
        %749 = vmatprep.subr.bf16.mxu0 0
        %750 = vmatpush1.bf16.msra.mxu0 %v714
        %751 = vmatprep.subr.bf16.mxu0 0
        %752 = vmatpush1.bf16.msra.mxu0 %v715
        %753 = vmatprep.subr.bf16.mxu0 0
        %754 = vmatpush1.bf16.msra.mxu0 %v716
        %755 = vmatprep.subr.bf16.mxu0 0
        %756 = vmatpush1.bf16.msra.mxu0 %v717
        %757 = vmatprep.subr.bf16.mxu0 0
        %758 = vmatpush1.bf16.msra.mxu0 %v718
        %759 = vmatprep.subr.bf16.mxu0 0
        %760 = vmatpush1.bf16.msra.mxu0 %v719
        %761 = vmatprep.subr.bf16.mxu0 0
        %762 = vmatpush1.bf16.msra.mxu0 %v720
        %763 = vmatprep.subr.bf16.mxu0 0
        %764 = vmatpush1.bf16.msra.mxu0 %v721
        %765 = vmatprep.subr.bf16.mxu0 0
        %766 = vmatpush1.bf16.msra.mxu0 %v722
        %767 = vmatprep.subr.bf16.mxu0 0
        %768 = vmatpush1.bf16.msra.mxu0 %v723
        %769 = vmatprep.subr.bf16.mxu0 0
        %770 = vmatpush1.bf16.msra.mxu0 %v724
        %771 = vmatprep.subr.bf16.mxu0 0
        %772 = vmatpush1.bf16.msra.mxu0 %v725
        %773 = vmatprep.subr.bf16.mxu0 0
        %774 = vmatpush1.bf16.msra.mxu0 %v726
        %775 = vmatprep.mubr.bf16.mxu0 %v607
        %776 = vmatmul.mubr.bf16.gmra.mrb[0].mxu0 %v606
        %v777 = vpop.f32.mrb[0].mxu0
        %v778 = vadd.f32 %v645, %v777
        %v779 = vpop.f32.mrb[0].mxu0
        %v780 = vpop.f32.mrb[0].mxu0
        %v781 = vadd.f32 %v645, %v780
        %v782 = vpop.f32.mrb[0].mxu0
        %783 = vdwg.mxu0
        %v784 = vmul.f32 %v778, 0.5
        %v785 = vmul.f32 %v781, 0.5
        %v786 = vmul.f32 %v778, 0.70710677
        %v787 = vmul.f32 %v781, 0.70710677
        %v788 = verf.f32.pop %v786
        %v789 = verf.f32.pop %v787
        %v790 = vadd.f32 %v788, 1.0
        %v791 = vadd.f32 %v789, 1.0
        %v792 = vmul.f32 %v784, %v790
        %v793 = vmul.f32 %v785, %v791
        %v794 = vld [vmem:[#allocation3] sm:$0xff]
        %v795 = vld [vmem:[#allocation3 + $0x8] sm:$0xff]
        %v796 = vpack.c.bf16 %v793, %v792
        %v797 = vld [vmem:[%s353] sm:$0xf]
        %v798 = vld [vmem:[%s353 + $0x4] sm:$0xf]
        %v799 = vld [vmem:[%s353 + $0x8] sm:$0xf]
        %v800 = vld [vmem:[%s353 + $0xc] sm:$0xf]
        %v801 = vld [vmem:[%s353 + $0x10] sm:$0xf]
        %v802 = vld [vmem:[%s353 + $0x14] sm:$0xf]
        %v803 = vld [vmem:[%s353 + $0x18] sm:$0xf]
        %v804 = vld [vmem:[%s353 + $0x1c] sm:$0xf]
        %v805 = vld [vmem:[%s353 + $0x20] sm:$0xf]
        %v806 = vld [vmem:[%s353 + $0x24] sm:$0xf]
        %v807 = vld [vmem:[%s353 + $0x28] sm:$0xf]
        %v808 = vld [vmem:[%s353 + $0x2c] sm:$0xf]
        %v809 = vld [vmem:[%s353 + $0x30] sm:$0xf]
        %v810 = vld [vmem:[%s353 + $0x34] sm:$0xf]
        %v811 = vld [vmem:[%s353 + $0x38] sm:$0xf]
        %v812 = vld [vmem:[%s353 + $0x3c] sm:$0xf]
        %v829 = vunpack.c.l.b16 %v797
        %v830 = vunpack.c.l.b16 %v798
        %v831 = vunpack.c.l.b16 %v799
        %v832 = vunpack.c.l.b16 %v800
        %v833 = vunpack.c.l.b16 %v801
        %v834 = vunpack.c.l.b16 %v802
        %v835 = vunpack.c.l.b16 %v803
        %v836 = vunpack.c.l.b16 %v804
        %v837 = vunpack.c.l.b16 %v805
        %v838 = vunpack.c.l.b16 %v806
        %v839 = vunpack.c.l.b16 %v807
        %v840 = vunpack.c.l.b16 %v808
        %v841 = vunpack.c.l.b16 %v809
        %v842 = vunpack.c.l.b16 %v810
        %v843 = vunpack.c.l.b16 %v811
        %v844 = vunpack.c.l.b16 %v812
        %v845 = vpack.c.b16 %v830, %v829
        %v846 = vpack.c.b16 %v832, %v831
        %v847 = vpack.c.b16 %v834, %v833
        %v848 = vpack.c.b16 %v836, %v835
        %v849 = vpack.c.b16 %v838, %v837
        %v850 = vpack.c.b16 %v840, %v839
        %v851 = vpack.c.b16 %v842, %v841
        %v852 = vpack.c.b16 %v844, %v843
        %861 = vmatprep.subr.bf16.mxu0 0
        %862 = vmatpush1.bf16.msra.mxu0 %v845
        %863 = vmatprep.subr.bf16.mxu0 0
        %864 = vmatpush1.bf16.msra.mxu0 %v846
        %865 = vmatprep.subr.bf16.mxu0 0
        %866 = vmatpush1.bf16.msra.mxu0 %v847
        %867 = vmatprep.subr.bf16.mxu0 0
        %868 = vmatpush1.bf16.msra.mxu0 %v848
        %869 = vmatprep.subr.bf16.mxu0 0
        %870 = vmatpush1.bf16.msra.mxu0 %v849
        %871 = vmatprep.subr.bf16.mxu0 0
        %872 = vmatpush1.bf16.msra.mxu0 %v850
        %873 = vmatprep.subr.bf16.mxu0 0
        %874 = vmatpush1.bf16.msra.mxu0 %v851
        %875 = vmatprep.subr.bf16.mxu0 0
        %876 = vmatpush1.bf16.msra.mxu0 %v852
        %877 = vmatprep.subr.bf16.mxu0 0
        %878 = vmatpush1.bf16.msra.mxu0 0
        %879 = vmatprep.subr.bf16.mxu0 0
        %880 = vmatpush1.bf16.msra.mxu0 0
        %881 = vmatprep.subr.bf16.mxu0 0
        %882 = vmatpush1.bf16.msra.mxu0 0
        %883 = vmatprep.subr.bf16.mxu0 0
        %884 = vmatpush1.bf16.msra.mxu0 0
        %885 = vmatprep.subr.bf16.mxu0 0
        %886 = vmatpush1.bf16.msra.mxu0 0
        %887 = vmatprep.subr.bf16.mxu0 0
        %888 = vmatpush1.bf16.msra.mxu0 0
        %889 = vmatprep.subr.bf16.mxu0 0
        %890 = vmatpush1.bf16.msra.mxu0 0
        %891 = vmatprep.subr.bf16.mxu0 0
        %892 = vmatpush1.bf16.msra.mxu0 0
        %893 = vmatprep.mubr.bf16.mxu0 0
        %894 = vmatmul.mubr.bf16.gmra.mrb[0].mxu0 %v796
        %v895 = vpop.f32.mrb[0].mxu0
        %v896 = vadd.f32 0.0, %v895
        %v897 = vpop.f32.mrb[0].mxu0
        %v898 = vpop.f32.mrb[0].mxu0
        %v899 = vadd.f32 0.0, %v898
        %v900 = vpop.f32.mrb[0].mxu0
        %901 = vdwg.mxu0
        %v902 = vadd.f32 %v794, %v896
        %v903 = vadd.f32 %v795, %v899
        %904 = vst [vmem:[#allocation3] sm:$0xff] %v902
        %905 = vst [vmem:[#allocation3 + $0x8] sm:$0xff] %v903
        %p906 = scmp.eq.s32.totalorder %s32, 1
        // Predicated region
        $region65: #{tpu_custom_call.1} parent=47 // pred_check
          %p907 = pneg %p906
        $region66: #{tpu_custom_call.1} parent=47 // pred_check_branch
          %909 = sbr.rel (%p907) target = $region68
        $region67: #{tpu_custom_call.1} parent=47 // pred_region
          %v910 = vld [vmem:[#allocation3] sm:$0xff]
          %v911 = vld [vmem:[#allocation3 + $0x8] sm:$0xff]
          %v912 = vld [vmem:[%s6] sm:$0x1]
          %v914 = vlaneseq
          %v915 = vshrl.u32 %v914, 7
          %v916 = vsub.s32 0, %v915
          %v917 = vrot.slane %v912, %v916
          %v919 = vadd.f32 %v910, %v917
          %v920 = vadd.f32 %v911, %v917
          %921 = vst [vmem:[%s396] sm:$0xff] %v919
          %922 = vst [vmem:[%s396 + $0x8] sm:$0xff] %v920
        $region68: #{tpu_custom_call.1} parent=47 // pred_fallthru
          _
        %s923 = sand.u32 %s214, 1
        %s924 = scalar_lea.sflag [#allocation6], %s923
        %s925 = sand.u32 %s214, 1
        %s926 = smul.addr %s925, 16
        %s927 = scalar_lea.vmem [#allocation10], %s926
        // Predicated region
        $region69: #{tpu_custom_call.1} parent=47 // pred_check
          %p928 = pneg %p224
        $region70: #{tpu_custom_call.1} parent=47 // pred_check_branch
          %930 = sbr.rel (%p928) target = $region72
        $region71: #{tpu_custom_call.1} parent=47 // pred_region
          %s931 = smul.u32 2, %s31
          %s933 = ssub.s32 256, 256
          %934 = vsyncadd %s924, %s933
          %s935 = smul.addr %s931, 128
          %s936 = scalar_lea.hbm %s7, %s935
          %s937 = sshll.u32 %s927, 4
          %s938 = int_to_ptr.vmem [resolvable:$true] %s937
          %943 = dma.vmem_to_hbm [thread:$0]  %s938, 256, %s936, %s924, 128, 128, 8
        $region72: #{tpu_custom_call.1} parent=47 // pred_fallthru
          _
      $region48: #{tpu_custom_call.1} parent=5 // pred_fallthru
        _
      %p944 = scmp.le.s32.totalorder 2, %s22
      // Predicated region
      $region73: #{tpu_custom_call.1} parent=5 // pred_check
        %p945 = pneg %p944
      $region74: #{tpu_custom_call.1} parent=5 // pred_check_branch
        %947 = sbr.rel (%p945) target = $region76
      $region75: #{tpu_custom_call.1} parent=5 // pred_region
        %s948 = ssub.s32 %s22, 2
        // Predicated region
        $region77: #{tpu_custom_call.1} parent=75 // pred_check
          %p949 = pneg %p230
        $region78: #{tpu_custom_call.1} parent=75 // pred_check_branch
          %951 = sbr.rel (%p949) target = $region80
        $region79: #{tpu_custom_call.1} parent=75 // pred_region
          %s952 = sand.u32 %s215, 1
          %s953 = scalar_lea.sflag [#allocation6], %s952
          %s954 = sand.u32 %s215, 1
          %s955 = smul.addr %s954, 16
          %s956 = scalar_lea.vmem [#allocation10], %s955
          %957 = dma.done %s953, 256
        $region80: #{tpu_custom_call.1} parent=75 // pred_fallthru
          _
      $region76: #{tpu_custom_call.1} parent=5 // pred_fallthru
        _
    $region6: #{tpu_custom_call.1} parent=1 // loop_footer
      %s26 = sadd.s32 1, %s22
    $region7: #{tpu_custom_call.1} parent=1 // loop_footer_branch
      %21 = sbr.rel target = $region3
    $region8: #{tpu_custom_call.1} parent=1 // loop_exit
      _
    %958 = vsyncpa [#allocation5], 1
    %s959 = scalar_lea.sflag [#allocation5], 1
    %960 = vsyncpa %s959, 1
    %961 = vsyncpa [#allocation8], 1
    %s962 = scalar_lea.sflag [#allocation8], 1
    %963 = vsyncpa %s962, 1
    %964 = vsyncpa [#allocation6], 1
    %s965 = scalar_lea.sflag [#allocation6], 1
    %966 = vsyncpa %s965, 1

</llo_original>
